<compile_context>
chip_gen: v7x
topology: tpu7x:2x2x1
jax: 0.10.0
libtpu: 0.0.40
codegen_flags: <defaults>
</compile_context>

<pallas_src>
import jax
import jax.numpy as jnp
from jax.experimental import pallas as pl
from jax.experimental.pallas import tpu as pltpu


def _attention_kernel(b_ref, x_ref, w_ref, o_ref):
    """One grid step processes a (TB, T, H) slab of the batch.

    b_ref: (1,)  SMEM    -- Linear bias (scalar)
    x_ref: (TB, T, H)    -- input block (native dtype)
    w_ref: (1, H)        -- Linear weight row
    o_ref: (TB, H)       -- pooled output block (sublane/lane dense)
    """
    x = x_ref[...]                                   # (TB, T, H)
    tb, t, h = x.shape
    bias = b_ref[0]

    # ---- Linear(H, 1): VPU multiply + lane reduction (stationary weight) ----
    # scores[b, t] = sum_h x[b, t, h] * w[0, h] + bias   (exact f32 accumulate)
    wv = w_ref[...].reshape(1, 1, h).astype(jnp.float32)                # (1, 1, H)
    scores = jnp.sum(x * wv, axis=-1) + bias                            # (TB, T) f32

    # ---- softmax over the sequence axis (dim=1 of the original input) ----
    m = jnp.max(scores, axis=-1, keepdims=True)                         # (TB, 1)
    e = jnp.exp(scores - m)                                             # (TB, T)
    denom = jnp.sum(e, axis=-1, keepdims=True)                          # (TB, 1)
    inv = pl.reciprocal(denom, approx=False)                            # (TB, 1) exact

    # ---- weighted sum over T: VPU multiply + sublane reduction ----
    # Normalize whichever tensor is smaller; weights kept in f32 throughout.
    if t <= h:
        weights = e * inv                                               # (TB, T) f32
        out = jnp.sum(weights[:, :, None] * x, axis=1)                  # (TB, H) f32
    else:
        out = jnp.sum(e[:, :, None] * x, axis=1) * inv                  # (TB, H) f32

    o_ref[...] = out.astype(o_ref.dtype)                                # dense store


def _round_up(v, m):
    return (v + m - 1) // m * m


def _choose_block_b(B, T, H, itemsize):
    """~1-4 MiB x blocks, bounded padding waste, >=4 grid steps when B allows."""
    row_bytes = T * H * itemsize
    target = 2 * 1024 * 1024                                   # ~2 MiB per x block
    block_b = max(8, (target // max(row_bytes, 1)) // 8 * 8)
    block_b = min(block_b, 1024)                               # bound padding waste
    if B >= 32:
        # >= 4 grid steps -> >= 2 blocks per TensorCore on v7x (megacore balance
        # + real intra-TC double-buffer overlap).
        block_b = min(block_b, max(8, _round_up(B // 4, 8)))
    elif B > 8:
        # at least 2 steps so the pipeline has something to overlap.
        block_b = min(block_b, max(8, _round_up(B // 2, 8)))
    return max(8, min(block_b, _round_up(B, 8)))


def attention_forward(x, w, b, *, block_b=None, vmem_limit_bytes=None):
    """Pallas TPU forward of the PyTorch Attention module.

    x: (B, T, H), w: (1, H), b: (1,)  ->  (B, H)
    """
    B, T, H = x.shape
    itemsize = jnp.dtype(x.dtype).itemsize

    if block_b is None:
        block_b = _choose_block_b(B, T, H, itemsize)
    block_b = max(8, _round_up(min(block_b, _round_up(B, 8)), 8))

    if vmem_limit_bytes is None:
        # Generation-aware: v5e/v6e have 128 MiB VMEM, v7x only 64 MiB per TC.
        try:
            vmem_cap = pltpu.get_tpu_info().vmem_capacity_bytes
        except Exception:
            vmem_cap = 64 * 1024 * 1024
        vmem_limit_bytes = min(vmem_cap // 2, 32 * 1024 * 1024)

    Bp = _round_up(B, block_b)
    if Bp != B:
        # Zero padding is safe: padded rows get a uniform softmax over zero
        # inputs -> zero output, and are sliced off below.
        x = jnp.pad(x, ((0, Bp - B), (0, 0), (0, 0)))

    grid = (Bp // block_b,)

    # Bandwidth-bound op: tell XLA's scheduler how much HBM traffic it is.
    cost = pl.CostEstimate(
        flops=4 * Bp * T * H,
        transcendentals=Bp * T,
        bytes_accessed=Bp * T * H * itemsize + Bp * H * itemsize + H * itemsize,
    )

    out = pl.pallas_call(
        _attention_kernel,
        out_shape=jax.ShapeDtypeStruct((Bp, H), x.dtype),
        grid_spec=pltpu.PrefetchScalarGridSpec(
            num_scalar_prefetch=0,
            grid=grid,
            in_specs=[
                pl.BlockSpec((1,), lambda i: (0,), memory_space=pltpu.SMEM),  # bias
                pl.BlockSpec((block_b, T, H), lambda i: (i, 0, 0)),           # x slab
                pl.BlockSpec((1, H), lambda i: (0, 0)),                       # weight row
            ],
            out_specs=pl.BlockSpec((block_b, H), lambda i: (i, 0)),
        ),
        compiler_params=pltpu.CompilerParams(
            dimension_semantics=("parallel",),
            vmem_limit_bytes=vmem_limit_bytes,
        ),
        cost_estimate=cost,
    )(b, x, w)

    return out[:B] if Bp != B else out


def attention_reference(x, w, b):
    scores = jnp.einsum("bth,h->bt", x, w[0],
                        precision=jax.lax.Precision.HIGHEST) + b[0]   # (B, T)
    weights = jax.nn.softmax(scores, axis=1)                          # softmax over seq
    return jnp.einsum("bt,bth->bh", weights, x,
                      precision=jax.lax.Precision.HIGHEST)            # (B, H)


if __name__ == "__main__":
    B, T, H = 32, 8, 128  # batch, seq, hidden -> 4 grid steps, lane-aligned hidden

    key = jax.random.PRNGKey(0)
    kx, kw, kb = jax.random.split(key, 3)

    x = jax.random.normal(kx, (B, T, H), dtype=jnp.float32)
    # deterministic init of nn.Linear(hidden_size, 1) parameters
    bound = 1.0 / (H ** 0.5)
    w = jax.random.uniform(kw, (1, H), minval=-bound, maxval=bound, dtype=jnp.float32)
    b = jax.random.uniform(kb, (1,), minval=-bound, maxval=bound, dtype=jnp.float32)

    out = attention_forward(x, w, b)
    out = jax.block_until_ready(out)

    ref = attention_reference(x, w, b)
    assert out.shape == (B, H)
    assert jnp.allclose(out, ref, atol=2e-5, rtol=2e-5), float(jnp.max(jnp.abs(out - ref)))

    print("KERNEL_OK")
</pallas_src>

<mosaic_0001>
module attributes {stable_mosaic.version = 11 : i64} {
  func.func @_attention_kernel(%arg0: i32, %arg1: memref<1xf32, #tpu.memory_space<smem>>, %arg2: memref<8x8x128xf32, #tpu.memory_space<vmem>>, %arg3: memref<1x128xf32, #tpu.memory_space<vmem>>, %arg4: memref<8x128xf32, #tpu.memory_space<vmem>>) attributes {dimension_semantics = [#tpu.dimension_semantics<parallel>], iteration_bounds = array<i64: 4>, scalar_prefetch = 0 : i64, scratch_operands = 0 : i64, tpu.core_type = #tpu.core_type<tc>, window_params = [{transform_indices = @transform_0, window_bounds = array<i64: 1>}, {transform_indices = @transform_1, window_bounds = array<i64: 8, 8, 128>}, {pipeline_mode = #tpu.pipeline_mode<synchronous>, transform_indices = @transform_2, window_bounds = array<i64: 1, 128>}, {transform_indices = @transform_3, window_bounds = array<i64: 8, 128>}]} {
    %c0 = arith.constant 0 : index
    %c0_0 = arith.constant 0 : index
    %c0_1 = arith.constant 0 : index
    %0 = vector.load %arg2[%c0, %c0_0, %c0_1] : memref<8x8x128xf32, #tpu.memory_space<vmem>>, vector<8x8x128xf32>
    %c0_2 = arith.constant 0 : index
    %1 = memref.load %arg1[%c0_2] : memref<1xf32, #tpu.memory_space<smem>>
    %c0_3 = arith.constant 0 : index
    %c0_4 = arith.constant 0 : index
    %2 = vector.load %arg3[%c0_3, %c0_4] : memref<1x128xf32, #tpu.memory_space<vmem>>, vector<1x128xf32>
    %3 = vector.shape_cast %2 : vector<1x128xf32> to vector<1x1x128xf32>
    %4 = vector.broadcast %3 : vector<1x1x128xf32> to vector<8x8x128xf32>
    %5 = arith.mulf %0, %4 : vector<8x8x128xf32>
    %cst = arith.constant dense<0.000000e+00> : vector<8x8xf32>
    %6 = vector.multi_reduction <add>, %5, %cst [2] : vector<8x8x128xf32> to vector<8x8xf32>
    %7 = vector.broadcast %1 : f32 to vector<8x8xf32>
    %8 = arith.addf %6, %7 : vector<8x8xf32>
    %cst_5 = arith.constant dense<0xFF800000> : vector<8xf32>
    %9 = vector.multi_reduction <maximumf>, %8, %cst_5 [1] : vector<8x8xf32> to vector<8xf32>
    %10 = vector.shape_cast %9 : vector<8xf32> to vector<8x1xf32>
    %11 = vector.broadcast %10 : vector<8x1xf32> to vector<8x8xf32>
    %12 = arith.subf %8, %11 : vector<8x8xf32>
    %13 = math.exp %12 : vector<8x8xf32>
    %cst_6 = arith.constant dense<0.000000e+00> : vector<8xf32>
    %14 = vector.multi_reduction <add>, %13, %cst_6 [1] : vector<8x8xf32> to vector<8xf32>
    %15 = vector.shape_cast %14 : vector<8xf32> to vector<8x1xf32>
    %16 = tpu.reciprocal %15 : vector<8x1xf32> -> vector<8x1xf32>
    %17 = vector.broadcast %16 : vector<8x1xf32> to vector<8x8xf32>
    %18 = arith.mulf %13, %17 : vector<8x8xf32>
    %19 = vector.shape_cast %18 : vector<8x8xf32> to vector<8x8x1xf32>
    %20 = vector.broadcast %19 : vector<8x8x1xf32> to vector<8x8x128xf32>
    %21 = arith.mulf %20, %0 : vector<8x8x128xf32>
    %cst_7 = arith.constant dense<0.000000e+00> : vector<8x128xf32>
    %22 = vector.multi_reduction <add>, %21, %cst_7 [1] : vector<8x8x128xf32> to vector<8x128xf32>
    %c0_8 = arith.constant 0 : index
    %c0_9 = arith.constant 0 : index
    %23 = vector.load %arg4[%c0_8, %c0_9] : memref<8x128xf32, #tpu.memory_space<vmem>>, vector<8x128xf32>
    tpu.vector_store %arg4[%c0_8, %c0_9], %22 {strides = array<i32>} : memref<8x128xf32, #tpu.memory_space<vmem>>, vector<8x128xf32>,
    return
  }
  func.func @transform_0(%arg0: i32) -> i32 {
    %c0_i32 = arith.constant 0 : i32
    %c0_i32_0 = arith.constant 0 : i32
    return %c0_i32 : i32
  }
  func.func @transform_1(%arg0: i32) -> (i32, i32, i32) {
    %c0_i32 = arith.constant 0 : i32
    %c0_i32_0 = arith.constant 0 : i32
    %c0_i32_1 = arith.constant 0 : i32
    return %arg0, %c0_i32, %c0_i32_0 : i32, i32, i32
  }
  func.func @transform_2(%arg0: i32) -> (i32, i32) {
    %c0_i32 = arith.constant 0 : i32
    %c0_i32_0 = arith.constant 0 : i32
    %c0_i32_1 = arith.constant 0 : i32
    return %c0_i32, %c0_i32_0 : i32, i32
  }
  func.func @transform_3(%arg0: i32) -> (i32, i32) {
    %c0_i32 = arith.constant 0 : i32
    %c0_i32_0 = arith.constant 0 : i32
    return %arg0, %c0_i32 : i32, i32
  }
}

</mosaic_0001>

<llo_original>
// kernel: tpu_custom_call.1
$region0: #{tpu_custom_call.1}
  #allocation0 [shape = 'u32[]', space=smem, size = 0x4, offset = 0x4, fixed_abs, tag = 'smem constant byte address 0x4 - core index']
  #allocation1 [shape = 'u32[144,128]{1,0:T(1,128)}', space=vmem, size = 0x12000, scoped, tag = 'internal scratch']
  #allocation2 [shape = 'f32[1]{0:T(128)S(6)}', space=smem, size = 0x200, scoped, tag = 'scoped memory for tpu_custom_call.1']
  %s0 = inlined_call_operand.<no memory space> [shape: f32[1], index: 0, kind: input, shape index: {}]
  %s1 = inlined_call_operand.hbm [shape: f32[32,8,128], index: 1, kind: input, shape index: {}]
  %s2 = inlined_call_operand.vmem [shape: f32[1,128], index: 2, kind: input, shape index: {}]
  %s3 = inlined_call_operand.hbm [shape: f32[32,128], index: 3, kind: output, shape index: {}]
  %s4 = sld [smem:[#allocation0]]
  $region49: #{tpu_custom_call.1} parent=0
    _
  %s6 = ssub.s32 1, %s4
  %s7 = scalar_select 0, %s6, %s4
  %8 = sst [smem:[#allocation2]] %s0
  $region1: #{tpu_custom_call.1} parent=0
    #allocation3 [shape = 'u8[65536]{0}', space=vmem, size = 0x10000, scoped, tag = 'input window, operand 1']
    #allocation4 [shape = 's32[2]{0}', space=sflag, size = 0x8, scoped, tag = 'scoped memory for tpu_custom_call.1']
    #allocation5 [shape = 's32[2]{0}', space=sflag, size = 0x8, scoped, tag = 'scoped memory for tpu_custom_call.1']
    #allocation6 [shape = 'u8[8192]{0}', space=vmem, size = 0x2000, scoped, tag = 'output window, operand 0']
    %9 = vsyncpa [#allocation4], 0
    %s10 = scalar_lea.sflag [#allocation4], 1
    %11 = vsyncpa %s10, 0
    %12 = vsyncpa [#allocation5], 0
    %s13 = scalar_lea.sflag [#allocation5], 1
    %14 = vsyncpa %s13, 0
    loop: start=0, step=1, limit=6
    $region2: #{tpu_custom_call.1} parent=1 // loop_pre_header
      _
    $region3: #{tpu_custom_call.1} parent=1 // loop_header
      %s16 = sphi 0, %s20
      %p17 = scmp.ge.s32.totalorder %s16, 6
      %s24 = sphi 0, %s24
      %s26 = sphi 0, %s24
      %s27 = sphi 0, %s26
      %s41 = sphi 0, %s27
      %s47 = sphi 0, %s49
      %s50 = sphi 0, %s47
      %s51 = sphi 0, %s50
      %s67 = sphi 0, %s51
      %s71 = sphi 0, %s71
      %s73 = sphi 0, %s71
      %s74 = sphi 0, %s73
      %s88 = sphi 0, %s74
      %s94 = sphi 0, %s96
      %s97 = sphi 0, %s94
      %s98 = sphi 0, %s97
      %s114 = sphi 0, %s98
    $region4: #{tpu_custom_call.1} parent=1 // loop_header_branch
      %19 = sbr.rel (%p17) target = $region8
    $region5: #{tpu_custom_call.1} parent=1 // loop_body
      %s21 = ssub.s32 %s16, 1
      %s22 = ssub.s32 %s16, 2
      %s23 = sadd.s32 %s16, 1
      %s25 = sadd.s32 %s24, 1
      %p28 = scmp.eq.s32.totalorder %s16, 3
      %p29 = scmp.ne.s32.totalorder %s24, %s26
      %p30 = scmp.eq.s32.totalorder %s16, 0
      %p31 = por %p29, %p30
      %p32 = scmp.ne.s32.totalorder %s24, %s26
      %p33 = scmp.eq.s32.totalorder %s21, 3
      %p34 = por %p32, %p33
      %p35 = scmp.ne.s32.totalorder %s26, %s27
      %p36 = scmp.eq.s32.totalorder %s21, 0
      %p37 = por %p35, %p36
      %p38 = scmp.ne.s32.totalorder %s26, %s27
      %p39 = scmp.eq.s32.totalorder %s22, 3
      %p40 = por %p38, %p39
      %p42 = scmp.ne.s32.totalorder %s27, %s41
      %p43 = scmp.eq.s32.totalorder %s22, 0
      %p44 = por %p42, %p43
      %s45 = ssub.s32 %s16, %s23
      %p46 = scmp.eq.s32.totalorder %s45, 0
      %s48 = sadd.s32 %s47, 1
      %s49 = scalar_select %p46, %s47, %s48
      %p52 = pneg %p46
      %p53 = scmp.eq.s32.totalorder %s16, 3
      %p54 = por %p52, %p53
      %p55 = scmp.ne.s32.totalorder %s47, %s50
      %p56 = scmp.eq.s32.totalorder %s16, 0
      %p57 = por %p55, %p56
      %p58 = scmp.ne.s32.totalorder %s47, %s50
      %p59 = scmp.eq.s32.totalorder %s21, 3
      %p60 = por %p58, %p59
      %p61 = scmp.ne.s32.totalorder %s50, %s51
      %p62 = scmp.eq.s32.totalorder %s21, 0
      %p63 = por %p61, %p62
      %p64 = scmp.ne.s32.totalorder %s50, %s51
      %p65 = scmp.eq.s32.totalorder %s22, 3
      %p66 = por %p64, %p65
      %p68 = scmp.ne.s32.totalorder %s51, %s67
      %p69 = scmp.eq.s32.totalorder %s22, 0
      %p70 = por %p68, %p69
      %s72 = sadd.s32 %s71, 1
      %p75 = scmp.eq.s32.totalorder %s16, 3
      %p76 = scmp.ne.s32.totalorder %s71, %s73
      %p77 = scmp.eq.s32.totalorder %s16, 0
      %p78 = por %p76, %p77
      %p79 = scmp.ne.s32.totalorder %s71, %s73
      %p80 = scmp.eq.s32.totalorder %s21, 3
      %p81 = por %p79, %p80
      %p82 = scmp.ne.s32.totalorder %s73, %s74
      %p83 = scmp.eq.s32.totalorder %s21, 0
      %p84 = por %p82, %p83
      %p85 = scmp.ne.s32.totalorder %s73, %s74
      %p86 = scmp.eq.s32.totalorder %s22, 3
      %p87 = por %p85, %p86
      %p89 = scmp.ne.s32.totalorder %s74, %s88
      %p90 = scmp.eq.s32.totalorder %s22, 0
      %p91 = por %p89, %p90
      %s92 = ssub.s32 %s16, %s23
      %p93 = scmp.eq.s32.totalorder %s92, 0
      %s95 = sadd.s32 %s94, 1
      %s96 = scalar_select %p93, %s94, %s95
      %p99 = pneg %p93
      %p100 = scmp.eq.s32.totalorder %s16, 3
      %p101 = por %p99, %p100
      %p102 = scmp.ne.s32.totalorder %s94, %s97
      %p103 = scmp.eq.s32.totalorder %s16, 0
      %p104 = por %p102, %p103
      %p105 = scmp.ne.s32.totalorder %s94, %s97
      %p106 = scmp.eq.s32.totalorder %s21, 3
      %p107 = por %p105, %p106
      %p108 = scmp.ne.s32.totalorder %s97, %s98
      %p109 = scmp.eq.s32.totalorder %s21, 0
      %p110 = por %p108, %p109
      %p111 = scmp.ne.s32.totalorder %s97, %s98
      %p112 = scmp.eq.s32.totalorder %s22, 3
      %p113 = por %p111, %p112
      %p115 = scmp.ne.s32.totalorder %s98, %s114
      %p116 = scmp.eq.s32.totalorder %s22, 0
      %p117 = por %p115, %p116
      %p118 = scmp.le.s32.totalorder 1, %s16
      %p119 = scmp.lt.s32.totalorder %s16, 5
      %p120 = pnand %p118, %p119
      %p121 = pneg %p120
      // Predicated region
      $region9: #{tpu_custom_call.1} parent=5 // pred_check
        _
      $region10: #{tpu_custom_call.1} parent=5 // pred_check_branch
        %123 = sbr.rel (%p120) target = $region12
      $region11: #{tpu_custom_call.1} parent=5 // pred_region
        %s124 = ssub.s32 %s16, 1
        // Predicated region
        $region13: #{tpu_custom_call.1} parent=11 // pred_check
          %p125 = pneg %p37
        $region14: #{tpu_custom_call.1} parent=11 // pred_check_branch
          %127 = sbr.rel (%p125) target = $region16
        $region15: #{tpu_custom_call.1} parent=11 // pred_region
          _
        $region16: #{tpu_custom_call.1} parent=11 // pred_fallthru
          _
        // Predicated region
        $region17: #{tpu_custom_call.1} parent=11 // pred_check
          %p128 = pneg %p84
        $region18: #{tpu_custom_call.1} parent=11 // pred_check_branch
          %130 = sbr.rel (%p128) target = $region20
        $region19: #{tpu_custom_call.1} parent=11 // pred_region
          _
        $region20: #{tpu_custom_call.1} parent=11 // pred_fallthru
          _
      $region12: #{tpu_custom_call.1} parent=5 // pred_fallthru
        _
      %p131 = scmp.lt.s32.totalorder %s16, 4
      // Predicated region
      $region21: #{tpu_custom_call.1} parent=5 // pred_check
        %p132 = pneg %p131
      $region22: #{tpu_custom_call.1} parent=5 // pred_check_branch
        %134 = sbr.rel (%p132) target = $region24
      $region23: #{tpu_custom_call.1} parent=5 // pred_region
        // Predicated region
        $region25: #{tpu_custom_call.1} parent=23 // pred_check
          %p135 = pneg %p57
        $region26: #{tpu_custom_call.1} parent=23 // pred_check_branch
          %137 = sbr.rel (%p135) target = $region28
        $region27: #{tpu_custom_call.1} parent=23 // pred_region
          %s138 = sand.u32 %s47, 1
          %s139 = scalar_lea.sflag [#allocation4], %s138
          %s140 = sand.u32 %s47, 1
          %s141 = smul.addr %s140, 64
          %s142 = scalar_lea.vmem [#allocation3], %s141
          %s143 = smul.u32 8, %s16
          %s145 = ssub.s32 1024, 1024
          %146 = vsyncadd %s139, %s145
          %s147 = smul.addr %s143, 128
          %s148 = scalar_lea.hbm %s1, %s147
          %s149 = sshll.u32 %s142, 4
          %s150 = int_to_ptr.vmem [resolvable:$true] %s149
          %155 = dma.hbm_to_vmem [thread:$0]  %s148, 1024, %s150, %s139, 128, 128, 8
        $region28: #{tpu_custom_call.1} parent=23 // pred_fallthru
          _
      $region24: #{tpu_custom_call.1} parent=5 // pred_fallthru
        _
      %p156 = scmp.le.s32.totalorder 1, %s16
      %p157 = scmp.lt.s32.totalorder %s16, 5
      %p158 = pnand %p156, %p157
      %p159 = pneg %p158
      // Predicated region
      $region29: #{tpu_custom_call.1} parent=5 // pred_check
        _
      $region30: #{tpu_custom_call.1} parent=5 // pred_check_branch
        %161 = sbr.rel (%p158) target = $region32
      $region31: #{tpu_custom_call.1} parent=5 // pred_region
        %s162 = ssub.s32 %s16, 1
        %s163 = sand.u32 %s50, 1
        %s164 = scalar_lea.sflag [#allocation4], %s163
        %s165 = sand.u32 %s50, 1
        %s166 = smul.addr %s165, 64
        %s167 = scalar_lea.vmem [#allocation3], %s166
        // Predicated region
        $region33: #{tpu_custom_call.1} parent=31 // pred_check
          %p168 = pneg %p63
        $region34: #{tpu_custom_call.1} parent=31 // pred_check_branch
          %170 = sbr.rel (%p168) target = $region36
        $region35: #{tpu_custom_call.1} parent=31 // pred_region
          %171 = dma.done %s164, 1024
        $region36: #{tpu_custom_call.1} parent=31 // pred_fallthru
          _
        %p172 = pneg %p37
        %p173 = pneg %p34
        %s174 = sand.u32 %s50, 1
        %s175 = scalar_lea.sflag [#allocation4], %s174
        %s176 = sand.u32 %s50, 1
        %s177 = smul.addr %s176, 64
        %s178 = scalar_lea.vmem [#allocation3], %s177
        %p179 = pneg %p63
        %p180 = pneg %p60
        %p181 = pneg %p84
        %p182 = pneg %p81
        %p183 = pneg %p110
        %p184 = pneg %p107
        %s185 = sand.u32 %s97, 1
        %s186 = scalar_lea.sflag [#allocation5], %s185
        %s187 = sand.u32 %s97, 1
        %s188 = smul.addr %s187, 8
        %s189 = scalar_lea.vmem [#allocation6], %s188
        %s190 = smul.u32 8, %s21
        %v191 = vld [vmem:[%s167] sm:$0xff]
        %v192 = vld [vmem:[%s167 + $0x8] sm:$0xff]
        %v193 = vld [vmem:[%s167 + $0x10] sm:$0xff]
        %v194 = vld [vmem:[%s167 + $0x18] sm:$0xff]
        %v195 = vld [vmem:[%s167 + $0x20] sm:$0xff]
        %v196 = vld [vmem:[%s167 + $0x28] sm:$0xff]
        %v197 = vld [vmem:[%s167 + $0x30] sm:$0xff]
        %v198 = vld [vmem:[%s167 + $0x38] sm:$0xff]
        %s199 = sld [smem:[#allocation2]]
        %v200 = vld [vmem:[%s2] sm:$0x1]
        %v202 = vlaneseq
        %v203 = vshrl.u32 %v202, 7
        %v204 = vsub.s32 0, %v203
        %v205 = vrot.slane %v200, %v204
        %v207 = vmul.f32 %v191, %v205
        %v208 = vmul.f32 %v192, %v205
        %v209 = vmul.f32 %v193, %v205
        %v210 = vmul.f32 %v194, %v205
        %v211 = vmul.f32 %v195, %v205
        %v212 = vmul.f32 %v196, %v205
        %v213 = vmul.f32 %v197, %v205
        %v214 = vmul.f32 %v198, %v205
        %215 = vadd.xlane.f32.xlu0 %v207
        %v216 = vpop.xlane.xlu0 %215
        %217 = vadd.xlane.f32.xlu0 %v208
        %v218 = vpop.xlane.xlu0 %217
        %219 = vadd.xlane.f32.xlu0 %v209
        %v220 = vpop.xlane.xlu0 %219
        %221 = vadd.xlane.f32.xlu0 %v210
        %v222 = vpop.xlane.xlu0 %221
        %223 = vadd.xlane.f32.xlu0 %v211
        %v224 = vpop.xlane.xlu0 %223
        %225 = vadd.xlane.f32.xlu0 %v212
        %v226 = vpop.xlane.xlu0 %225
        %227 = vadd.xlane.f32.xlu0 %v213
        %v228 = vpop.xlane.xlu0 %227
        %229 = vadd.xlane.f32.xlu0 %v214
        %v230 = vpop.xlane.xlu0 %229
        %v231 = vstv %s199
        %v232 = vadd.f32 %v216, %v231
        %v233 = vadd.f32 %v218, %v231
        %v234 = vadd.f32 %v220, %v231
        %v235 = vadd.f32 %v222, %v231
        %v236 = vadd.f32 %v224, %v231
        %v237 = vadd.f32 %v226, %v231
        %v238 = vadd.f32 %v228, %v231
        %v239 = vadd.f32 %v230, %v231
        %v248 = vlaneseq
        %v249 = vand.u32 %v248, 127
        %v250 = vlaneseq
        %v251 = vshrl.u32 %v250, 7
        %v252 = vsub.s32 %v249, %v251
        %v253 = vrot.slane %v232, %v252
        %v254 = vlaneseq
        %v255 = vshrl.u32 %v254, 7
        %v256 = vsub.s32 %v249, %v255
        %v257 = vrot.slane %v233, %v256
        %v258 = vlaneseq
        %v259 = vshrl.u32 %v258, 7
        %v260 = vsub.s32 %v249, %v259
        %v261 = vrot.slane %v234, %v260
        %v262 = vlaneseq
        %v263 = vshrl.u32 %v262, 7
        %v264 = vsub.s32 %v249, %v263
        %v265 = vrot.slane %v235, %v264
        %v266 = vlaneseq
        %v267 = vshrl.u32 %v266, 7
        %v268 = vsub.s32 %v249, %v267
        %v269 = vrot.slane %v236, %v268
        %v270 = vlaneseq
        %v271 = vshrl.u32 %v270, 7
        %v272 = vsub.s32 %v249, %v271
        %v273 = vrot.slane %v237, %v272
        %v274 = vlaneseq
        %v275 = vshrl.u32 %v274, 7
        %v276 = vsub.s32 %v249, %v275
        %v277 = vrot.slane %v238, %v276
        %v278 = vlaneseq
        %v279 = vshrl.u32 %v278, 7
        %v280 = vsub.s32 %v249, %v279
        %v281 = vrot.slane %v239, %v280
        %vm282 = vcmask 1041409
        %v283 = vsel %vm282, %v257, %v253
        %vm284 = vcmask 1042434
        %v285 = vsel %vm284, %v261, %v283
        %vm286 = vcmask 1043459
        %v287 = vsel %vm286, %v265, %v285
        %vm288 = vcmask 1044484
        %v289 = vsel %vm288, %v269, %v287
        %vm290 = vcmask 1045509
        %v291 = vsel %vm290, %v273, %v289
        %vm292 = vcmask 1046534
        %v293 = vsel %vm292, %v277, %v291
        %vm294 = vcmask 1047559
        %v295 = vsel %vm294, %v281, %v293
        %vm297 = vcmask 64512
        %v298 = vsel %vm297, %v295, -inf
        %299 = vmax.xlane.f32.xlu0 %v298
        %v300 = vpop.xlane.xlu0 %299
        %v302 = vlaneseq
        %v303 = vshrl.u32 %v302, 7
        %v304 = vsub.s32 0, %v303
        %v305 = vrot.slane %v300, %v304
        %v306 = vlaneseq
        %v307 = vshrl.u32 %v306, 7
        %v308 = vsub.s32 1, %v307
        %v309 = vrot.slane %v300, %v308
        %v310 = vlaneseq
        %v311 = vshrl.u32 %v310, 7
        %v312 = vsub.s32 2, %v311
        %v313 = vrot.slane %v300, %v312
        %v314 = vlaneseq
        %v315 = vshrl.u32 %v314, 7
        %v316 = vsub.s32 3, %v315
        %v317 = vrot.slane %v300, %v316
        %v318 = vlaneseq
        %v319 = vshrl.u32 %v318, 7
        %v320 = vsub.s32 4, %v319
        %v321 = vrot.slane %v300, %v320
        %v322 = vlaneseq
        %v323 = vshrl.u32 %v322, 7
        %v324 = vsub.s32 5, %v323
        %v325 = vrot.slane %v300, %v324
        %v326 = vlaneseq
        %v327 = vshrl.u32 %v326, 7
        %v328 = vsub.s32 6, %v327
        %v329 = vrot.slane %v300, %v328
        %v330 = vlaneseq
        %v331 = vshrl.u32 %v330, 7
        %v332 = vsub.s32 7, %v331
        %v333 = vrot.slane %v300, %v332
        %v342 = vsub.f32 %v232, %v305
        %v343 = vsub.f32 %v233, %v309
        %v344 = vsub.f32 %v234, %v313
        %v345 = vsub.f32 %v235, %v317
        %v346 = vsub.f32 %v236, %v321
        %v347 = vsub.f32 %v237, %v325
        %v348 = vsub.f32 %v238, %v329
        %v349 = vsub.f32 %v239, %v333
        %v350 = vmul.f32 %v342, 1.442695
        %v351 = vpow.pop %v350
        %v352 = vmul.f32 %v343, 1.442695
        %v353 = vpow.pop %v352
        %v354 = vmul.f32 %v344, 1.442695
        %v355 = vpow.pop %v354
        %v356 = vmul.f32 %v345, 1.442695
        %v357 = vpow.pop %v356
        %v358 = vmul.f32 %v346, 1.442695
        %v359 = vpow.pop %v358
        %v360 = vmul.f32 %v347, 1.442695
        %v361 = vpow.pop %v360
        %v362 = vmul.f32 %v348, 1.442695
        %v363 = vpow.pop %v362
        %v364 = vmul.f32 %v349, 1.442695
        %v365 = vpow.pop %v364
        %374 = vset.pattern.permute.xlu0 0
        %375 = vperm.xlu0 %374, %v351
        %v376 = vpop.permute.xlu0 %375
        %377 = vset.pattern.permute.xlu0 0
        %378 = vperm.xlu0 %377, %v353
        %v379 = vpop.permute.xlu0 %378
        %380 = vset.pattern.permute.xlu0 0
        %381 = vperm.xlu0 %380, %v355
        %v382 = vpop.permute.xlu0 %381
        %383 = vset.pattern.permute.xlu0 0
        %384 = vperm.xlu0 %383, %v357
        %v385 = vpop.permute.xlu0 %384
        %386 = vset.pattern.permute.xlu0 0
        %387 = vperm.xlu0 %386, %v359
        %v388 = vpop.permute.xlu0 %387
        %389 = vset.pattern.permute.xlu0 0
        %390 = vperm.xlu0 %389, %v361
        %v391 = vpop.permute.xlu0 %390
        %392 = vset.pattern.permute.xlu0 0
        %393 = vperm.xlu0 %392, %v363
        %v394 = vpop.permute.xlu0 %393
        %395 = vset.pattern.permute.xlu0 0
        %396 = vperm.xlu0 %395, %v365
        %v397 = vpop.permute.xlu0 %396
        %v398 = vlaneseq
        %v399 = vshrl.u32 %v398, 7
        %v400 = vsub.s32 %v249, %v399
        %v401 = vrot.slane %v376, %v400
        %v402 = vlaneseq
        %v403 = vshrl.u32 %v402, 7
        %v404 = vsub.s32 %v249, %v403
        %v405 = vrot.slane %v379, %v404
        %v406 = vlaneseq
        %v407 = vshrl.u32 %v406, 7
        %v408 = vsub.s32 %v249, %v407
        %v409 = vrot.slane %v382, %v408
        %v410 = vlaneseq
        %v411 = vshrl.u32 %v410, 7
        %v412 = vsub.s32 %v249, %v411
        %v413 = vrot.slane %v385, %v412
        %v414 = vlaneseq
        %v415 = vshrl.u32 %v414, 7
        %v416 = vsub.s32 %v249, %v415
        %v417 = vrot.slane %v388, %v416
        %v418 = vlaneseq
        %v419 = vshrl.u32 %v418, 7
        %v420 = vsub.s32 %v249, %v419
        %v421 = vrot.slane %v391, %v420
        %v422 = vlaneseq
        %v423 = vshrl.u32 %v422, 7
        %v424 = vsub.s32 %v249, %v423
        %v425 = vrot.slane %v394, %v424
        %v426 = vlaneseq
        %v427 = vshrl.u32 %v426, 7
        %v428 = vsub.s32 %v249, %v427
        %v429 = vrot.slane %v397, %v428
        %v430 = vsel %vm282, %v405, %v401
        %v431 = vsel %vm284, %v409, %v430
        %v432 = vsel %vm286, %v413, %v431
        %v433 = vsel %vm288, %v417, %v432
        %v434 = vsel %vm290, %v421, %v433
        %v435 = vsel %vm292, %v425, %v434
        %v436 = vsel %vm294, %v429, %v435
        %v438 = vsel %vm297, %v436, 0.0
        %439 = vadd.xlane.f32.xlu0 %v438
        %v440 = vpop.xlane.xlu0 %439
        %v441 = vrcp.pop %v440
        %v443 = vlaneseq
        %v444 = vshrl.u32 %v443, 7
        %v445 = vsub.s32 0, %v444
        %v446 = vrot.slane %v441, %v445
        %v447 = vlaneseq
        %v448 = vshrl.u32 %v447, 7
        %v449 = vsub.s32 1, %v448
        %v450 = vrot.slane %v441, %v449
        %v451 = vlaneseq
        %v452 = vshrl.u32 %v451, 7
        %v453 = vsub.s32 2, %v452
        %v454 = vrot.slane %v441, %v453
        %v455 = vlaneseq
        %v456 = vshrl.u32 %v455, 7
        %v457 = vsub.s32 3, %v456
        %v458 = vrot.slane %v441, %v457
        %v459 = vlaneseq
        %v460 = vshrl.u32 %v459, 7
        %v461 = vsub.s32 4, %v460
        %v462 = vrot.slane %v441, %v461
        %v463 = vlaneseq
        %v464 = vshrl.u32 %v463, 7
        %v465 = vsub.s32 5, %v464
        %v466 = vrot.slane %v441, %v465
        %v467 = vlaneseq
        %v468 = vshrl.u32 %v467, 7
        %v469 = vsub.s32 6, %v468
        %v470 = vrot.slane %v441, %v469
        %v471 = vlaneseq
        %v472 = vshrl.u32 %v471, 7
        %v473 = vsub.s32 7, %v472
        %v474 = vrot.slane %v441, %v473
        %v483 = vmul.f32 %v351, %v446
        %v484 = vmul.f32 %v353, %v450
        %v485 = vmul.f32 %v355, %v454
        %v486 = vmul.f32 %v357, %v458
        %v487 = vmul.f32 %v359, %v462
        %v488 = vmul.f32 %v361, %v466
        %v489 = vmul.f32 %v363, %v470
        %v490 = vmul.f32 %v365, %v474
        %492 = vset.pattern.permute.xlu0 0
        %493 = vperm.xlu0 %492, %v483
        %v494 = vpop.permute.xlu0 %493
        %497 = vset.pattern.permute.xlu0 0
        %498 = vperm.xlu0 %497, %v484
        %v499 = vpop.permute.xlu0 %498
        %502 = vset.pattern.permute.xlu0 0
        %503 = vperm.xlu0 %502, %v485
        %v504 = vpop.permute.xlu0 %503
        %507 = vset.pattern.permute.xlu0 0
        %508 = vperm.xlu0 %507, %v486
        %v509 = vpop.permute.xlu0 %508
        %512 = vset.pattern.permute.xlu0 0
        %513 = vperm.xlu0 %512, %v487
        %v514 = vpop.permute.xlu0 %513
        %517 = vset.pattern.permute.xlu0 0
        %518 = vperm.xlu0 %517, %v488
        %v519 = vpop.permute.xlu0 %518
        %522 = vset.pattern.permute.xlu0 0
        %523 = vperm.xlu0 %522, %v489
        %v524 = vpop.permute.xlu0 %523
        %527 = vset.pattern.permute.xlu0 0
        %528 = vperm.xlu0 %527, %v490
        %v529 = vpop.permute.xlu0 %528
        %v531 = vmul.f32 %v494, %v191
        %v532 = vmul.f32 %v499, %v192
        %v533 = vmul.f32 %v504, %v193
        %v534 = vmul.f32 %v509, %v194
        %v535 = vmul.f32 %v514, %v195
        %v536 = vmul.f32 %v519, %v196
        %v537 = vmul.f32 %v524, %v197
        %v538 = vmul.f32 %v529, %v198
        %v539 = vrot.slane %v531, 4
        %v540 = vadd.f32 %v531, %v539
        %v541 = vrot.slane %v540, 2
        %v542 = vadd.f32 %v540, %v541
        %v543 = vrot.slane %v542, 1
        %v544 = vadd.f32 %v542, %v543
        %v545 = vrot.slane %v532, 4
        %v546 = vadd.f32 %v532, %v545
        %v547 = vrot.slane %v546, 2
        %v548 = vadd.f32 %v546, %v547
        %v549 = vrot.slane %v548, 1
        %v550 = vadd.f32 %v548, %v549
        %v551 = vrot.slane %v533, 4
        %v552 = vadd.f32 %v533, %v551
        %v553 = vrot.slane %v552, 2
        %v554 = vadd.f32 %v552, %v553
        %v555 = vrot.slane %v554, 1
        %v556 = vadd.f32 %v554, %v555
        %v557 = vrot.slane %v534, 4
        %v558 = vadd.f32 %v534, %v557
        %v559 = vrot.slane %v558, 2
        %v560 = vadd.f32 %v558, %v559
        %v561 = vrot.slane %v560, 1
        %v562 = vadd.f32 %v560, %v561
        %v563 = vrot.slane %v535, 4
        %v564 = vadd.f32 %v535, %v563
        %v565 = vrot.slane %v564, 2
        %v566 = vadd.f32 %v564, %v565
        %v567 = vrot.slane %v566, 1
        %v568 = vadd.f32 %v566, %v567
        %v569 = vrot.slane %v536, 4
        %v570 = vadd.f32 %v536, %v569
        %v571 = vrot.slane %v570, 2
        %v572 = vadd.f32 %v570, %v571
        %v573 = vrot.slane %v572, 1
        %v574 = vadd.f32 %v572, %v573
        %v575 = vrot.slane %v537, 4
        %v576 = vadd.f32 %v537, %v575
        %v577 = vrot.slane %v576, 2
        %v578 = vadd.f32 %v576, %v577
        %v579 = vrot.slane %v578, 1
        %v580 = vadd.f32 %v578, %v579
        %v581 = vrot.slane %v538, 4
        %v582 = vadd.f32 %v538, %v581
        %v583 = vrot.slane %v582, 2
        %v584 = vadd.f32 %v582, %v583
        %v585 = vrot.slane %v584, 1
        %v586 = vadd.f32 %v584, %v585
        %v595 = vsel %vm282, %v550, %v544
        %v596 = vsel %vm284, %v556, %v595
        %v597 = vsel %vm286, %v562, %v596
        %v598 = vsel %vm288, %v568, %v597
        %v599 = vsel %vm290, %v574, %v598
        %v600 = vsel %vm292, %v580, %v599
        %v601 = vsel %vm294, %v586, %v600
        %603 = vst [vmem:[%s189] sm:$0xff] %v601
        %s604 = sand.u32 %s97, 1
        %s605 = scalar_lea.sflag [#allocation5], %s604
        %s606 = sand.u32 %s97, 1
        %s607 = smul.addr %s606, 8
        %s608 = scalar_lea.vmem [#allocation6], %s607
        // Predicated region
        $region37: #{tpu_custom_call.1} parent=31 // pred_check
          %p609 = pneg %p107
        $region38: #{tpu_custom_call.1} parent=31 // pred_check_branch
          %611 = sbr.rel (%p609) target = $region40
        $region39: #{tpu_custom_call.1} parent=31 // pred_region
          %s613 = ssub.s32 128, 128
          %614 = vsyncadd %s605, %s613
          %s615 = smul.addr %s21, 128
          %s616 = scalar_lea.hbm %s3, %s615
          %s618 = sshll.u32 %s608, 4
          %s619 = int_to_ptr.vmem [resolvable:$true] %s618
          %621 = dma.vmem_to_hbm [thread:$0]  %s619, 128, %s616, %s605
        $region40: #{tpu_custom_call.1} parent=31 // pred_fallthru
          _
      $region32: #{tpu_custom_call.1} parent=5 // pred_fallthru
        _
      %p622 = scmp.le.s32.totalorder 2, %s16
      // Predicated region
      $region41: #{tpu_custom_call.1} parent=5 // pred_check
        %p623 = pneg %p622
      $region42: #{tpu_custom_call.1} parent=5 // pred_check_branch
        %625 = sbr.rel (%p623) target = $region44
      $region43: #{tpu_custom_call.1} parent=5 // pred_region
        %s626 = ssub.s32 %s16, 2
        // Predicated region
        $region45: #{tpu_custom_call.1} parent=43 // pred_check
          %p627 = pneg %p113
        $region46: #{tpu_custom_call.1} parent=43 // pred_check_branch
          %629 = sbr.rel (%p627) target = $region48
        $region47: #{tpu_custom_call.1} parent=43 // pred_region
          %s630 = sand.u32 %s98, 1
          %s631 = scalar_lea.sflag [#allocation5], %s630
          %s632 = sand.u32 %s98, 1
          %s633 = smul.addr %s632, 8
          %s634 = scalar_lea.vmem [#allocation6], %s633
          %635 = dma.done %s631, 128
        $region48: #{tpu_custom_call.1} parent=43 // pred_fallthru
          _
      $region44: #{tpu_custom_call.1} parent=5 // pred_fallthru
        _
    $region6: #{tpu_custom_call.1} parent=1 // loop_footer
      %s20 = sadd.s32 1, %s16
    $region7: #{tpu_custom_call.1} parent=1 // loop_footer_branch
      %15 = sbr.rel target = $region3
    $region8: #{tpu_custom_call.1} parent=1 // loop_exit
      _
    %636 = vsyncpa [#allocation4], 1
    %s637 = scalar_lea.sflag [#allocation4], 1
    %638 = vsyncpa %s637, 1
    %639 = vsyncpa [#allocation5], 1
    %s640 = scalar_lea.sflag [#allocation5], 1
    %641 = vsyncpa %s640, 1

</llo_original>
